<compile_context>
chip_gen: v6e
topology: v6e:2x2x1
jax: 0.10.0
libtpu: 0.0.40
codegen_flags: <defaults>
</compile_context>

<pallas_src>
import functools

import jax
import jax.numpy as jnp
from jax.experimental import pallas as pl
from jax.experimental.pallas import tpu as pltpu

_LANE = 128
# Conservative tile budget (double-buffered in + out) -- fits comfortably under
# the default scoped VMEM limit on every chip (v5e 16 MiB, v6e/v7x 32 MiB).
_TILE_VMEM_BUDGET = 8 * 1024 * 1024
_VMEM_LIMIT_BYTES = 32 * 1024 * 1024  # <= physical VMEM on v5e/v6e/v7x


def _polynomial_kernel(x_ref, w_ref, o_ref, *, order: int):
    # x_ref: (1, TM)  lane-major slice of x (N on lanes)
    # w_ref: (F, 1)   full weight vector (resident, block index constant)
    # o_ref: (F, TM)  lane-dense output tile
    xp = x_ref[...] ** order            # integer_pow on the VPU, once per N-tile
    o_ref[...] = xp * w_ref[...]        # (1,TM)*(F,1) -> (F,TM) broadcast multiply


def polynomial_forward(x: jax.Array, weight: jax.Array, order: int,
                       tm_max: int | None = None) -> jax.Array:
    """x: (N,), weight: (F,) -> (N, F); matches the PyTorch Polynomial.forward."""
    assert x.ndim == 1 and weight.ndim == 1
    assert int(order) == order, "order must be an integer (matches torch pow semantics)"
    order = int(order)

    n = x.shape[0]
    f = weight.shape[0]
    dtype = x.dtype
    weight = weight.astype(dtype)       # pin output dtype to x.dtype

    # ---- tile sizing: largest lane tile that fits the VMEM budget ----------
    bytes_per_lane_col = 2 * 4 * (f + 1)          # dbl-buffered f32 x-col + out-col
    tm = (_TILE_VMEM_BUDGET // bytes_per_lane_col) // _LANE * _LANE
    tm = max(_LANE, tm)
    if tm_max is not None:
        tm = max(_LANE, min(tm, (tm_max // _LANE) * _LANE))
    n_pad = pl.cdiv(n, _LANE) * _LANE
    tm = min(tm, n_pad)
    n_pad = pl.cdiv(n_pad, tm) * tm               # pad N to a whole number of tiles

    x_p = jnp.pad(x, (0, n_pad - n)) if n_pad != n else x
    x2 = x_p.reshape(1, n_pad)                    # N on the lane axis
    w2 = weight.reshape(f, 1)

    grid = (n_pad // tm,)
    cost = pl.CostEstimate(
        flops=n * f + max(order - 1, 0) * n,
        transcendentals=0,
        bytes_accessed=4 * (n + f + n * f),
    )

    out_fn = pl.pallas_call(
        functools.partial(_polynomial_kernel, order=order),
        out_shape=jax.ShapeDtypeStruct((f, n_pad), dtype),
        grid=grid,
        in_specs=[
            pl.BlockSpec((1, tm), lambda i: (0, i)),   # x tile, lane-dense
            pl.BlockSpec((f, 1), lambda i: (0, 0)),    # weight, resident
        ],
        out_specs=pl.BlockSpec((f, tm), lambda i: (0, i)),  # lane-dense store
        compiler_params=pltpu.CompilerParams(
            dimension_semantics=("parallel",),         # shard tiles over TCs (v7x)
            vmem_limit_bytes=_VMEM_LIMIT_BYTES,
        ),
        cost_estimate=cost,
    )
    out_fn_t = out_fn(x2, w2)                     # (F, N_pad)

    # Recover the PyTorch (N, F) result: drop padding, transpose (layout plumbing).
    return out_fn_t[:, :n].T


if __name__ == "__main__":
    key = jax.random.PRNGKey(0)

    # --- case 1: the module's canonical tiny shape -------------------------
    order = 2
    output_features = 4
    n = 8
    x = jax.random.normal(key, (n,), dtype=jnp.float32)
    weight = jnp.full((output_features,), 1.0, dtype=jnp.float32)  # torch.full(..., 1.0)

    out = jax.block_until_ready(polynomial_forward(x, weight, order))
    ref = (x ** order)[:, None] * weight[None, :]
    assert out.shape == (n, output_features)
    assert jnp.allclose(out, ref, atol=1e-6, rtol=1e-6)

    # --- case 2: exercise padding + multi-tile grid path --------------------
    k1, k2 = jax.random.split(key)
    order2, f2, n2 = 3, 5, 1000                    # N not a multiple of 128
    x2 = jax.random.normal(k1, (n2,), dtype=jnp.float32)
    w2 = jax.random.normal(k2, (f2,), dtype=jnp.float32)
    out2 = jax.block_until_ready(polynomial_forward(x2, w2, order2, tm_max=256))
    ref2 = (x2 ** order2)[:, None] * w2[None, :]
    assert out2.shape == (n2, f2)
    assert jnp.allclose(out2, ref2, atol=1e-5, rtol=1e-5)

    print("KERNEL_OK")
</pallas_src>

<mosaic_0001>
module attributes {stable_mosaic.version = 11 : i64} {
  func.func @_polynomial_kernel(%arg0: i32, %arg1: memref<1x128xf32, #tpu.memory_space<vmem>>, %arg2: memref<4x1xf32, #tpu.memory_space<vmem>>, %arg3: memref<4x128xf32, #tpu.memory_space<vmem>>) attributes {dimension_semantics = [#tpu.dimension_semantics<parallel>], iteration_bounds = array<i64: 1>, scalar_prefetch = 0 : i64, scratch_operands = 0 : i64, tpu.core_type = #tpu.core_type<tc>, window_params = [{transform_indices = @transform_0, window_bounds = array<i64: 1, 128>}, {pipeline_mode = #tpu.pipeline_mode<synchronous>, transform_indices = @transform_1, window_bounds = array<i64: 4, 1>}, {transform_indices = @transform_2, window_bounds = array<i64: 4, 128>}]} {
    %c0 = arith.constant 0 : index
    %c0_0 = arith.constant 0 : index
    %0 = vector.load %arg1[%c0, %c0_0] : memref<1x128xf32, #tpu.memory_space<vmem>>, vector<1x128xf32>
    %1 = arith.mulf %0, %0 : vector<1x128xf32>
    %c0_1 = arith.constant 0 : index
    %c0_2 = arith.constant 0 : index
    %2 = vector.load %arg2[%c0_1, %c0_2] : memref<4x1xf32, #tpu.memory_space<vmem>>, vector<4x1xf32>
    %3 = vector.broadcast %1 : vector<1x128xf32> to vector<4x128xf32>
    %4 = vector.broadcast %2 : vector<4x1xf32> to vector<4x128xf32>
    %5 = arith.mulf %3, %4 : vector<4x128xf32>
    %c0_3 = arith.constant 0 : index
    %c0_4 = arith.constant 0 : index
    %6 = vector.load %arg3[%c0_3, %c0_4] : memref<4x128xf32, #tpu.memory_space<vmem>>, vector<4x128xf32>
    tpu.vector_store %arg3[%c0_3, %c0_4], %5 {strides = array<i32>} : memref<4x128xf32, #tpu.memory_space<vmem>>, vector<4x128xf32>,
    return
  }
  func.func @transform_0(%arg0: i32) -> (i32, i32) {
    %c0_i32 = arith.constant 0 : i32
    %c0_i32_0 = arith.constant 0 : i32
    return %c0_i32, %arg0 : i32, i32
  }
  func.func @transform_1(%arg0: i32) -> (i32, i32) {
    %c0_i32 = arith.constant 0 : i32
    %c0_i32_0 = arith.constant 0 : i32
    %c0_i32_1 = arith.constant 0 : i32
    return %c0_i32, %c0_i32_0 : i32, i32
  }
  func.func @transform_2(%arg0: i32) -> (i32, i32) {
    %c0_i32 = arith.constant 0 : i32
    %c0_i32_0 = arith.constant 0 : i32
    return %c0_i32, %arg0 : i32, i32
  }
}

</mosaic_0001>

<llo_original>
// kernel: tpu_custom_call.1
$region0: #{tpu_custom_call.1}
  #allocation0 [shape = 'u32[]', space=smem, size = 0x4, offset = 0x4, fixed_abs, tag = 'smem constant byte address 0x4 - core index']
  #allocation1 [shape = 'u32[144,128]{1,0:T(1,128)}', space=vmem, size = 0x12000, scoped, tag = 'internal scratch']
  %s0 = inlined_call_operand.vmem [shape: f32[1,128], index: 0, kind: input, shape index: {}]
  %s1 = inlined_call_operand.vmem [shape: f32[4,1], index: 1, kind: input, shape index: {}]
  %s2 = inlined_call_operand.hbm [shape: f32[4,128], index: 2, kind: output, shape index: {}]
  %s3 = sld [smem:[#allocation0]]
  $region18: #{tpu_custom_call.1} parent=0
    _
  %s5 = ssub.s32 1, %s3
  %s6 = scalar_select 0, %s5, %s3
  $region1: #{tpu_custom_call.1} parent=0
    #allocation2 [shape = 'u8[2048]{0}', space=vmem, size = 0x800, scoped, tag = 'output window, operand 0, single buffered']
    #allocation3 [shape = 's32[1]{0}', space=sflag, size = 0x4, scoped, tag = 'scoped memory for tpu_custom_call.1']
    %7 = vsyncpa [#allocation3], 0
    // Predicated region
    $region2: #{tpu_custom_call.1} parent=1 // pred_check
      _
    $region3: #{tpu_custom_call.1} parent=1 // pred_check_branch
      %9 = sbr.rel (0) target = $region5
    $region4: #{tpu_custom_call.1} parent=1 // pred_region
      _
    $region5: #{tpu_custom_call.1} parent=1 // pred_fallthru
      _
    // Predicated region
    $region6: #{tpu_custom_call.1} parent=1 // pred_check
      _
    $region7: #{tpu_custom_call.1} parent=1 // pred_check_branch
      %11 = sbr.rel (0) target = $region9
    $region8: #{tpu_custom_call.1} parent=1 // pred_region
      _
    $region9: #{tpu_custom_call.1} parent=1 // pred_fallthru
      _
    %v12 = vld [vmem:[%s0] sm:$0x1]
    %v13 = vmul.f32 %v12, %v12
    %v14 = vld [vmem:[%s1] sm:$0xf]
    %v16 = vlaneseq
    %v17 = vshrl.u32 %v16, 7
    %v18 = vsub.s32 0, %v17
    %v19 = vrot.slane %v13, %v18
    %22 = vset.pattern.permute.xlu0 0
    %23 = vperm.xlu0 %22, %v14
    %v24 = vpop.permute.xlu0 %23
    %v26 = vmul.f32 %v19, %v24
    %27 = vst [vmem:[#allocation2] sm:$0xf] %v26
    // Predicated region
    $region10: #{tpu_custom_call.1} parent=1 // pred_check
      _
    $region11: #{tpu_custom_call.1} parent=1 // pred_check_branch
      %29 = sbr.rel (0) target = $region13
    $region12: #{tpu_custom_call.1} parent=1 // pred_region
      %s31 = ssub.s32 64, 64
      %32 = vsyncadd [#allocation3], %s31
      %s34 = sshll.u32 [#allocation2], 4
      %s35 = int_to_ptr.vmem [resolvable:$true] %s34
      %37 = dma.vmem_to_hbm [thread:$0]  %s35, 64, %s2, [#allocation3]
    $region13: #{tpu_custom_call.1} parent=1 // pred_fallthru
      _
    // Predicated region
    $region14: #{tpu_custom_call.1} parent=1 // pred_check
      _
    $region15: #{tpu_custom_call.1} parent=1 // pred_check_branch
      %39 = sbr.rel (0) target = $region17
    $region16: #{tpu_custom_call.1} parent=1 // pred_region
      %40 = dma.done [#allocation3], 64
    $region17: #{tpu_custom_call.1} parent=1 // pred_fallthru
      _
    %41 = vsyncpa [#allocation3], 1

</llo_original>
